<compile_context>
chip_gen: v7x
topology: tpu7x:2x2x1
jax: 0.10.0
libtpu: 0.0.40
codegen_flags: <defaults>
</compile_context>

<pallas_src>
import math

import jax
import jax.numpy as jnp
from jax.experimental import pallas as pl
from jax.experimental.pallas import tpu as pltpu


def _round_up(x, m):
    return ((x + m - 1) // m) * m


def _f_sparse_kernel(x_ref, wt_ref, b_ref, a_ref, o_ref):
    # x_ref : (TILE_ROWS, F_pad)   current row tile of src_emb
    # wt_ref: (F_pad, F_pad)       W.weight.T (resident across grid steps)
    # b_ref : (1, F_pad)           W.bias
    # a_ref : (1, F_pad)           a.weight (row vector)
    x = x_ref[...]
    # gates = x @ W^T + b   (MXU, accumulate in f32)
    h = jnp.dot(x, wt_ref[...], preferred_element_type=jnp.float32)
    h = h + b_ref[...].astype(jnp.float32)
    # gates = gates @ a^T  -> scalar per row (VPU mult + lane reduce keeps layouts dense)
    gate = jnp.sum(h * a_ref[...].astype(jnp.float32), axis=-1, keepdims=True)
    gate = jax.nn.sigmoid(gate)
    o_ref[...] = (gate * x.astype(jnp.float32)).astype(o_ref.dtype)


def f_sparse_op_last(g, src_emb, src_emb_in, W_weight, W_bias, a_weight, *, tile_rows=256):
    """Matches f_sparse_op_last.forward: sigmoid(a(W(src_emb))) * src_emb.

    g and src_emb_in are accepted (to mirror the 3-arg signature) but unused,
    exactly like the PyTorch reference.
    """
    del g, src_emb_in  # unused in the reference forward

    F = src_emb.shape[-1]
    x2d = src_emb.reshape(-1, F)
    N = x2d.shape[0]
    dtype = src_emb.dtype

    # Lane-dense padding: feature axis -> multiple of 128, row axis -> multiple of tile.
    F_pad = _round_up(F, 128)
    tile = min(tile_rows, _round_up(N, 8))
    N_pad = _round_up(N, tile)

    x_p = jnp.zeros((N_pad, F_pad), dtype).at[:N, :F].set(x2d)
    wt_p = jnp.zeros((F_pad, F_pad), dtype).at[:F, :F].set(W_weight.T)
    b_p = jnp.zeros((1, F_pad), dtype).at[0, :F].set(W_bias)
    a_p = jnp.zeros((1, F_pad), dtype).at[0, :F].set(a_weight.reshape(-1))

    grid = (N_pad // tile,)

    out = pl.pallas_call(
        _f_sparse_kernel,
        out_shape=jax.ShapeDtypeStruct((N_pad, F_pad), dtype),
        grid_spec=pltpu.PrefetchScalarGridSpec(
            num_scalar_prefetch=0,
            grid=grid,
            in_specs=[
                pl.BlockSpec((tile, F_pad), lambda i: (i, 0)),      # row tile of src_emb
                pl.BlockSpec((F_pad, F_pad), lambda i: (0, 0)),     # W^T, resident
                pl.BlockSpec((1, F_pad), lambda i: (0, 0)),         # bias, resident
                pl.BlockSpec((1, F_pad), lambda i: (0, 0)),         # a vector, resident
            ],
            out_specs=pl.BlockSpec((tile, F_pad), lambda i: (i, 0)),
        ),
        compiler_params=pltpu.CompilerParams(
            dimension_semantics=("parallel",),
            vmem_limit_bytes=64 * 1024 * 1024,
        ),
    )(x_p, wt_p, b_p, a_p)

    # TODO(synk): for genuinely tiny inputs a plain-JAX fallback would avoid the
    # custom-call dispatch overhead; kept on the Pallas path here so the kernel runs.
    return out[:N, :F].reshape(src_emb.shape)


def _reference(src_emb, W_weight, W_bias, a_weight):
    gates = src_emb @ W_weight.T + W_bias
    gates = gates @ a_weight.T
    return jax.nn.sigmoid(gates) * src_emb


if __name__ == "__main__":
    key = jax.random.PRNGKey(0)
    k_g, k_src, k_src_in, k_w, k_b, k_a = jax.random.split(key, 6)

    B, S, F = 2, 8, 32  # small shapes; feature_dim = 32
    g = jax.random.normal(k_g, (B, S), dtype=jnp.float32)               # unused context arg
    src_emb = jax.random.normal(k_src, (B, S, F), dtype=jnp.float32)
    src_emb_in = jax.random.normal(k_src_in, (B, S, F), dtype=jnp.float32)  # unused by forward

    # Parameters of W = Linear(F, F, bias=True) and a = Linear(F, 1, bias=False)
    W_weight = jax.random.normal(k_w, (F, F), dtype=jnp.float32) * 0.1
    W_bias = jax.random.normal(k_b, (F,), dtype=jnp.float32) * 0.1
    a_weight = jax.random.normal(k_a, (1, F), dtype=jnp.float32) * 0.1

    out = f_sparse_op_last(g, src_emb, src_emb_in, W_weight, W_bias, a_weight)
    out = jax.block_until_ready(out)

    expected = _reference(src_emb, W_weight, W_bias, a_weight)
    assert out.shape == expected.shape
    assert jnp.allclose(out, expected, atol=1e-5, rtol=1e-5), (
        float(jnp.max(jnp.abs(out - expected)))
    )

    print("KERNEL_OK")
</pallas_src>

<mosaic_0001>
module attributes {stable_mosaic.version = 11 : i64} {
  func.func @_f_sparse_kernel(%arg0: i32, %arg1: memref<16x128xf32, #tpu.memory_space<vmem>>, %arg2: memref<128x128xf32, #tpu.memory_space<vmem>>, %arg3: memref<1x128xf32, #tpu.memory_space<vmem>>, %arg4: memref<1x128xf32, #tpu.memory_space<vmem>>, %arg5: memref<16x128xf32, #tpu.memory_space<vmem>>) attributes {dimension_semantics = [#tpu.dimension_semantics<parallel>], iteration_bounds = array<i64: 1>, scalar_prefetch = 0 : i64, scratch_operands = 0 : i64, tpu.core_type = #tpu.core_type<tc>, window_params = [{transform_indices = @transform_0, window_bounds = array<i64: 16, 128>}, {pipeline_mode = #tpu.pipeline_mode<synchronous>, transform_indices = @transform_1, window_bounds = array<i64: 128, 128>}, {pipeline_mode = #tpu.pipeline_mode<synchronous>, transform_indices = @transform_2, window_bounds = array<i64: 1, 128>}, {pipeline_mode = #tpu.pipeline_mode<synchronous>, transform_indices = @transform_3, window_bounds = array<i64: 1, 128>}, {transform_indices = @transform_4, window_bounds = array<i64: 16, 128>}]} {
    %c0 = arith.constant 0 : index
    %c0_0 = arith.constant 0 : index
    %0 = vector.load %arg1[%c0, %c0_0] : memref<16x128xf32, #tpu.memory_space<vmem>>, vector<16x128xf32>
    %c0_1 = arith.constant 0 : index
    %c0_2 = arith.constant 0 : index
    %1 = vector.load %arg2[%c0_1, %c0_2] : memref<128x128xf32, #tpu.memory_space<vmem>>, vector<128x128xf32>
    %cst = arith.constant dense<0.000000e+00> : vector<16x128xf32>
    %2 = tpu.matmul %0, %1, %cst {dimension_numbers = #tpu.dot_dimension_numbers<[1], [0], [0], [1], [0, 0, 1, 1], [], []>} : vector<16x128xf32>, vector<128x128xf32>, vector<16x128xf32> -> vector<16x128xf32>
    %c0_3 = arith.constant 0 : index
    %c0_4 = arith.constant 0 : index
    %3 = vector.load %arg3[%c0_3, %c0_4] : memref<1x128xf32, #tpu.memory_space<vmem>>, vector<1x128xf32>
    %4 = vector.broadcast %3 : vector<1x128xf32> to vector<16x128xf32>
    %5 = arith.addf %2, %4 : vector<16x128xf32>
    %c0_5 = arith.constant 0 : index
    %c0_6 = arith.constant 0 : index
    %6 = vector.load %arg4[%c0_5, %c0_6] : memref<1x128xf32, #tpu.memory_space<vmem>>, vector<1x128xf32>
    %7 = vector.broadcast %6 : vector<1x128xf32> to vector<16x128xf32>
    %8 = arith.mulf %5, %7 : vector<16x128xf32>
    %cst_7 = arith.constant dense<0.000000e+00> : vector<16xf32>
    %9 = vector.multi_reduction <add>, %8, %cst_7 [1] : vector<16x128xf32> to vector<16xf32>
    %10 = vector.shape_cast %9 : vector<16xf32> to vector<16x1xf32>
    %11 = arith.negf %10 : vector<16x1xf32>
    %12 = math.exp %11 : vector<16x1xf32>
    %cst_8 = arith.constant 1.000000e+00 : f32
    %13 = vector.broadcast %cst_8 : f32 to vector<16x1xf32>
    %14 = arith.addf %13, %12 : vector<16x1xf32>
    %15 = arith.divf %13, %14 : vector<16x1xf32>
    %16 = vector.broadcast %15 : vector<16x1xf32> to vector<16x128xf32>
    %17 = arith.mulf %16, %0 : vector<16x128xf32>
    %c0_9 = arith.constant 0 : index
    %c0_10 = arith.constant 0 : index
    %18 = vector.load %arg5[%c0_9, %c0_10] : memref<16x128xf32, #tpu.memory_space<vmem>>, vector<16x128xf32>
    tpu.vector_store %arg5[%c0_9, %c0_10], %17 {strides = array<i32>} : memref<16x128xf32, #tpu.memory_space<vmem>>, vector<16x128xf32>,
    return
  }
  func.func @transform_0(%arg0: i32) -> (i32, i32) {
    %c0_i32 = arith.constant 0 : i32
    %c0_i32_0 = arith.constant 0 : i32
    return %arg0, %c0_i32 : i32, i32
  }
  func.func @transform_1(%arg0: i32) -> (i32, i32) {
    %c0_i32 = arith.constant 0 : i32
    %c0_i32_0 = arith.constant 0 : i32
    %c0_i32_1 = arith.constant 0 : i32
    return %c0_i32, %c0_i32_0 : i32, i32
  }
  func.func @transform_2(%arg0: i32) -> (i32, i32) {
    %c0_i32 = arith.constant 0 : i32
    %c0_i32_0 = arith.constant 0 : i32
    %c0_i32_1 = arith.constant 0 : i32
    return %c0_i32, %c0_i32_0 : i32, i32
  }
  func.func @transform_3(%arg0: i32) -> (i32, i32) {
    %c0_i32 = arith.constant 0 : i32
    %c0_i32_0 = arith.constant 0 : i32
    %c0_i32_1 = arith.constant 0 : i32
    return %c0_i32, %c0_i32_0 : i32, i32
  }
  func.func @transform_4(%arg0: i32) -> (i32, i32) {
    %c0_i32 = arith.constant 0 : i32
    %c0_i32_0 = arith.constant 0 : i32
    return %arg0, %c0_i32 : i32, i32
  }
}

</mosaic_0001>

<llo_original>
// kernel: tpu_custom_call.1
$region0: #{tpu_custom_call.1}
  #allocation0 [shape = 'u32[]', space=smem, size = 0x4, offset = 0x4, fixed_abs, tag = 'smem constant byte address 0x4 - core index']
  #allocation1 [shape = 'u32[144,128]{1,0:T(1,128)}', space=vmem, size = 0x12000, scoped, tag = 'internal scratch']
  %s0 = inlined_call_operand.hbm [shape: f32[16,128], index: 0, kind: input, shape index: {}]
  %s1 = inlined_call_operand.hbm [shape: f32[128,128], index: 1, kind: input, shape index: {}]
  %s2 = inlined_call_operand.hbm [shape: f32[1,128], index: 2, kind: input, shape index: {}]
  %s3 = inlined_call_operand.hbm [shape: f32[1,128], index: 3, kind: input, shape index: {}]
  %s4 = inlined_call_operand.hbm [shape: f32[16,128], index: 4, kind: output, shape index: {}]
  %s5 = sld [smem:[#allocation0]]
  $region42: #{tpu_custom_call.1} parent=0
    _
  %s7 = ssub.s32 1, %s5
  %s8 = scalar_select 0, %s7, %s5
  $region1: #{tpu_custom_call.1} parent=0
    #allocation2 [shape = 'u8[8192]{0}', space=vmem, size = 0x2000, scoped, tag = 'input window, operand 0, single buffered']
    #allocation3 [shape = 's32[1]{0}', space=sflag, size = 0x4, scoped, tag = 'scoped memory for tpu_custom_call.1']
    #allocation4 [shape = 's32[1]{0}', space=sflag, size = 0x4, scoped, tag = 'scoped memory for tpu_custom_call.1']
    #allocation5 [shape = 'u8[65536]{0}', space=vmem, size = 0x10000, scoped, tag = 'input window, operand 1, single buffered']
    #allocation6 [shape = 's32[1]{0}', space=sflag, size = 0x4, scoped, tag = 'scoped memory for tpu_custom_call.1']
    #allocation7 [shape = 'u8[512]{0}', space=vmem, size = 0x400, scoped, tag = 'input window, operand 2, single buffered']
    #allocation8 [shape = 'u8[512]{0}', space=vmem, size = 0x400, scoped, tag = 'input window, operand 3, single buffered']
    #allocation9 [shape = 's32[1]{0}', space=sflag, size = 0x4, scoped, tag = 'scoped memory for tpu_custom_call.1']
    #allocation10 [shape = 'u8[8192]{0}', space=vmem, size = 0x2000, scoped, tag = 'output window, operand 0, single buffered']
    %9 = vsyncpa [#allocation3], 0
    %10 = vsyncpa [#allocation6], 0
    %11 = vsyncpa [#allocation9], 0
    %12 = vsyncpa [#allocation4], 0
    // Predicated region
    $region2: #{tpu_custom_call.1} parent=1 // pred_check
      _
    $region3: #{tpu_custom_call.1} parent=1 // pred_check_branch
      %14 = sbr.rel (0) target = $region5
    $region4: #{tpu_custom_call.1} parent=1 // pred_region
      %s16 = ssub.s32 256, 256
      %17 = vsyncadd [#allocation3], %s16
      %s18 = sshll.u32 [#allocation2], 4
      %s19 = int_to_ptr.vmem [resolvable:$true] %s18
      %24 = dma.hbm_to_vmem [thread:$0]  %s0, 256, %s19, [#allocation3], 128, 128, 8
    $region5: #{tpu_custom_call.1} parent=1 // pred_fallthru
      _
    // Predicated region
    $region6: #{tpu_custom_call.1} parent=1 // pred_check
      _
    $region7: #{tpu_custom_call.1} parent=1 // pred_check_branch
      %26 = sbr.rel (0) target = $region9
    $region8: #{tpu_custom_call.1} parent=1 // pred_region
      %s28 = ssub.s32 2048, 2048
      %29 = vsyncadd [#allocation6], %s28
      %s30 = sshll.u32 [#allocation5], 4
      %s31 = int_to_ptr.vmem [resolvable:$true] %s30
      %36 = dma.hbm_to_vmem [thread:$0]  %s1, 2048, %s31, [#allocation6], 128, 128, 8
    $region9: #{tpu_custom_call.1} parent=1 // pred_fallthru
      _
    // Predicated region
    $region10: #{tpu_custom_call.1} parent=1 // pred_check
      _
    $region11: #{tpu_custom_call.1} parent=1 // pred_check_branch
      %38 = sbr.rel (0) target = $region13
    $region12: #{tpu_custom_call.1} parent=1 // pred_region
      %s40 = ssub.s32 16, 16
      %41 = vsyncadd [#allocation6], %s40
      %s43 = sshll.u32 [#allocation7], 4
      %s44 = int_to_ptr.vmem [resolvable:$true] %s43
      %46 = dma.hbm_to_vmem [thread:$0]  %s2, 16, %s44, [#allocation6]
    $region13: #{tpu_custom_call.1} parent=1 // pred_fallthru
      _
    // Predicated region
    $region14: #{tpu_custom_call.1} parent=1 // pred_check
      _
    $region15: #{tpu_custom_call.1} parent=1 // pred_check_branch
      %48 = sbr.rel (0) target = $region17
    $region16: #{tpu_custom_call.1} parent=1 // pred_region
      %s50 = ssub.s32 16, 16
      %51 = vsyncadd [#allocation9], %s50
      %s53 = sshll.u32 [#allocation8], 4
      %s54 = int_to_ptr.vmem [resolvable:$true] %s53
      %56 = dma.hbm_to_vmem [thread:$0]  %s3, 16, %s54, [#allocation9]
    $region17: #{tpu_custom_call.1} parent=1 // pred_fallthru
      _
    // Predicated region
    $region18: #{tpu_custom_call.1} parent=1 // pred_check
      _
    $region19: #{tpu_custom_call.1} parent=1 // pred_check_branch
      %58 = sbr.rel (0) target = $region21
    $region20: #{tpu_custom_call.1} parent=1 // pred_region
      %59 = dma.done [#allocation3], 256
    $region21: #{tpu_custom_call.1} parent=1 // pred_fallthru
      _
    // Predicated region
    $region22: #{tpu_custom_call.1} parent=1 // pred_check
      _
    $region23: #{tpu_custom_call.1} parent=1 // pred_check_branch
      %61 = sbr.rel (0) target = $region25
    $region24: #{tpu_custom_call.1} parent=1 // pred_region
      %62 = dma.done [#allocation6], 2048
    $region25: #{tpu_custom_call.1} parent=1 // pred_fallthru
      _
    // Predicated region
    $region26: #{tpu_custom_call.1} parent=1 // pred_check
      _
    $region27: #{tpu_custom_call.1} parent=1 // pred_check_branch
      %64 = sbr.rel (0) target = $region29
    $region28: #{tpu_custom_call.1} parent=1 // pred_region
      %65 = dma.done [#allocation6], 16
    $region29: #{tpu_custom_call.1} parent=1 // pred_fallthru
      _
    // Predicated region
    $region30: #{tpu_custom_call.1} parent=1 // pred_check
      _
    $region31: #{tpu_custom_call.1} parent=1 // pred_check_branch
      %67 = sbr.rel (0) target = $region33
    $region32: #{tpu_custom_call.1} parent=1 // pred_region
      %68 = dma.done [#allocation9], 16
    $region33: #{tpu_custom_call.1} parent=1 // pred_fallthru
      _
    %v69 = vld [vmem:[#allocation2] sm:$0xff]
    %v70 = vld [vmem:[#allocation2 + $0x8] sm:$0xff]
    %v71 = vld [vmem:[#allocation5] sm:$0xff]
    %v72 = vld [vmem:[#allocation5 + $0x8] sm:$0xff]
    %v73 = vld [vmem:[#allocation5 + $0x10] sm:$0xff]
    %v74 = vld [vmem:[#allocation5 + $0x18] sm:$0xff]
    %v75 = vld [vmem:[#allocation5 + $0x20] sm:$0xff]
    %v76 = vld [vmem:[#allocation5 + $0x28] sm:$0xff]
    %v77 = vld [vmem:[#allocation5 + $0x30] sm:$0xff]
    %v78 = vld [vmem:[#allocation5 + $0x38] sm:$0xff]
    %v79 = vld [vmem:[#allocation5 + $0x40] sm:$0xff]
    %v80 = vld [vmem:[#allocation5 + $0x48] sm:$0xff]
    %v81 = vld [vmem:[#allocation5 + $0x50] sm:$0xff]
    %v82 = vld [vmem:[#allocation5 + $0x58] sm:$0xff]
    %v83 = vld [vmem:[#allocation5 + $0x60] sm:$0xff]
    %v84 = vld [vmem:[#allocation5 + $0x68] sm:$0xff]
    %v85 = vld [vmem:[#allocation5 + $0x70] sm:$0xff]
    %v86 = vld [vmem:[#allocation5 + $0x78] sm:$0xff]
    %v87 = vld [vmem:[#allocation7] sm:$0x1]
    %v89 = vlaneseq
    %v90 = vshrl.u32 %v89, 7
    %v91 = vsub.s32 0, %v90
    %v92 = vrot.slane %v87, %v91
    %94 = vmatprep.subr.mxu0 0.0
    %95 = vmatpush1.msra.mxu0 %v71
    %96 = vmatprep.subr.mxu0 0.0
    %97 = vmatpush1.msra.mxu0 %v72
    %98 = vmatprep.subr.mxu0 0.0
    %99 = vmatpush1.msra.mxu0 %v73
    %100 = vmatprep.subr.mxu0 0.0
    %101 = vmatpush1.msra.mxu0 %v74
    %102 = vmatprep.subr.mxu0 0.0
    %103 = vmatpush1.msra.mxu0 %v75
    %104 = vmatprep.subr.mxu0 0.0
    %105 = vmatpush1.msra.mxu0 %v76
    %106 = vmatprep.subr.mxu0 0.0
    %107 = vmatpush1.msra.mxu0 %v77
    %108 = vmatprep.subr.mxu0 0.0
    %109 = vmatpush1.msra.mxu0 %v78
    %110 = vmatprep.subr.mxu0 0.0
    %111 = vmatpush1.msra.mxu0 %v79
    %112 = vmatprep.subr.mxu0 0.0
    %113 = vmatpush1.msra.mxu0 %v80
    %114 = vmatprep.subr.mxu0 0.0
    %115 = vmatpush1.msra.mxu0 %v81
    %116 = vmatprep.subr.mxu0 0.0
    %117 = vmatpush1.msra.mxu0 %v82
    %118 = vmatprep.subr.mxu0 0.0
    %119 = vmatpush1.msra.mxu0 %v83
    %120 = vmatprep.subr.mxu0 0.0
    %121 = vmatpush1.msra.mxu0 %v84
    %122 = vmatprep.subr.mxu0 0.0
    %123 = vmatpush1.msra.mxu0 %v85
    %124 = vmatprep.subr.mxu0 0.0
    %125 = vmatpush1.msra.mxu0 %v86
    %126 = vmatprep.subr.mxu0 0.0
    %127 = vmatpush1.msra.mxu0 0.0
    %128 = vmatprep.subr.mxu0 0.0
    %129 = vmatpush1.msra.mxu0 0.0
    %130 = vmatprep.subr.mxu0 0.0
    %131 = vmatpush1.msra.mxu0 0.0
    %132 = vmatprep.subr.mxu0 0.0
    %133 = vmatpush1.msra.mxu0 0.0
    %134 = vmatprep.subr.mxu0 0.0
    %135 = vmatpush1.msra.mxu0 0.0
    %136 = vmatprep.subr.mxu0 0.0
    %137 = vmatpush1.msra.mxu0 0.0
    %138 = vmatprep.subr.mxu0 0.0
    %139 = vmatpush1.msra.mxu0 0.0
    %140 = vmatprep.subr.mxu0 0.0
    %141 = vmatpush1.msra.mxu0 0.0
    %142 = vmatprep.subr.mxu0 0.0
    %143 = vmatpush1.msra.mxu0 0.0
    %144 = vmatprep.subr.mxu0 0.0
    %145 = vmatpush1.msra.mxu0 0.0
    %146 = vmatprep.subr.mxu0 0.0
    %147 = vmatpush1.msra.mxu0 0.0
    %148 = vmatprep.subr.mxu0 0.0
    %149 = vmatpush1.msra.mxu0 0.0
    %150 = vmatprep.subr.mxu0 0.0
    %151 = vmatpush1.msra.mxu0 0.0
    %152 = vmatprep.subr.mxu0 0.0
    %153 = vmatpush1.msra.mxu0 0.0
    %154 = vmatprep.subr.mxu0 0.0
    %155 = vmatpush1.msra.mxu0 0.0
    %156 = vmatprep.subr.mxu0 0.0
    %157 = vmatpush1.msra.mxu0 0.0
    %158 = vmatprep.mubr.f32.mxu0 0.0
    %159 = vmatmul.mubr.f32.gmra.mrb[0].mxu0 %v69
    %v160 = vpop.f32.mrb[0].mxu0
    %v161 = vadd.f32 %v92, %v160
    %v162 = vpop.f32.mrb[0].mxu0
    %163 = vmatprep.mubr.f32.mxu0 0.0
    %164 = vmatmul.mubr.f32.gmra.mrb[0].mxu0 %v70
    %v165 = vpop.f32.mrb[0].mxu0
    %v166 = vadd.f32 %v92, %v165
    %v167 = vpop.f32.mrb[0].mxu0
    %168 = vdwg.mxu0
    %v169 = vld [vmem:[#allocation8] sm:$0x1]
    %v171 = vlaneseq
    %v172 = vshrl.u32 %v171, 7
    %v173 = vsub.s32 0, %v172
    %v174 = vrot.slane %v169, %v173
    %v176 = vmul.f32 %v161, %v174
    %v177 = vmul.f32 %v166, %v174
    %178 = vadd.xlane.f32.xlu0 %v176
    %v179 = vpop.xlane.xlu0 %178
    %180 = vadd.xlane.f32.xlu0 %v177
    %v181 = vpop.xlane.xlu0 %180
    %v182 = vxor.u32 %v179, 2147483648
    %v183 = vxor.u32 %v181, 2147483648
    %v184 = vmul.f32 %v182, 1.442695
    %v185 = vpow.pop %v184
    %v186 = vmul.f32 %v183, 1.442695
    %v187 = vpow.pop %v186
    %v188 = vadd.f32 %v185, 1.0
    %v189 = vadd.f32 %v187, 1.0
    %v190 = vrcp.pop %v188
    %v191 = vmul.f32 1.0, %v190
    %v192 = vrcp.pop %v189
    %v193 = vmul.f32 1.0, %v192
    %v194 = vmul.f32 %v191, %v69
    %v195 = vmul.f32 %v193, %v70
    %196 = vst [vmem:[#allocation10] sm:$0xff] %v194
    %197 = vst [vmem:[#allocation10 + $0x8] sm:$0xff] %v195
    // Predicated region
    $region34: #{tpu_custom_call.1} parent=1 // pred_check
      _
    $region35: #{tpu_custom_call.1} parent=1 // pred_check_branch
      %199 = sbr.rel (0) target = $region37
    $region36: #{tpu_custom_call.1} parent=1 // pred_region
      %s201 = ssub.s32 256, 256
      %202 = vsyncadd [#allocation4], %s201
      %s203 = sshll.u32 [#allocation10], 4
      %s204 = int_to_ptr.vmem [resolvable:$true] %s203
      %209 = dma.vmem_to_hbm [thread:$0]  %s204, 256, %s4, [#allocation4], 128, 128, 8
    $region37: #{tpu_custom_call.1} parent=1 // pred_fallthru
      _
    // Predicated region
    $region38: #{tpu_custom_call.1} parent=1 // pred_check
      _
    $region39: #{tpu_custom_call.1} parent=1 // pred_check_branch
      %211 = sbr.rel (0) target = $region41
    $region40: #{tpu_custom_call.1} parent=1 // pred_region
      %212 = dma.done [#allocation4], 256
    $region41: #{tpu_custom_call.1} parent=1 // pred_fallthru
      _
    %213 = vsyncpa [#allocation3], 1
    %214 = vsyncpa [#allocation6], 1
    %215 = vsyncpa [#allocation9], 1
    %216 = vsyncpa [#allocation4], 1

</llo_original>
